<compile_context>
chip_gen: v6e
topology: v6e:2x2x1
jax: 0.10.0
libtpu: 0.0.40
codegen_flags: <defaults>
</compile_context>

<pallas_src>
import jax
import jax.numpy as jnp
from jax import lax
from jax.experimental import pallas as pl
from jax.experimental.pallas import tpu as pltpu

# config constants (deterministic, in-script; the module pulled them from `config`)
TRANSLATION_LOSS_WEIGHT = 1.0
ROTATION_LOSS_WEIGHT = 10.0
QUATERNION_NORM_WEIGHT = 0.1

EPS = 1e-12              # F.normalize default eps
R_DIM = 4                # quaternion (w, x, y, z)
T_DIM = 3                # translation (x, y, z)

_SMALL_BATCH_MAX = 1024      # single-block path ceiling (~2 MiB resident VMEM)
_DEFAULT_BATCH_TILE = 2048   # lane-dense tile for the batch-gridded path


# --------------------------------------------------------------------------
# Small-batch path: grid=(), four full-array VMEM inputs, SMEM scalar params.
# --------------------------------------------------------------------------
def _combined_loss_small_kernel(s_ref, pr_ref, gr_ref, pt_ref, gt_ref, out_ref):
    """s_ref: (5,) f32 SMEM [1/B, 1/(3B), t_w, r_w, q_w]."""
    pr = pr_ref[...].astype(jnp.float32)              # (B, 4)
    gr = gr_ref[...].astype(jnp.float32)              # (B, 4)
    pt = pt_ref[...].astype(jnp.float32)              # (B, 3)
    gt = gt_ref[...].astype(jnp.float32)              # (B, 3)

    inv_b = s_ref[0]
    inv_b3 = s_ref[1]

    # translation MSE (mean over B*3 elements)
    d = pt - gt
    trans_loss = jnp.sum(d * d) * inv_b3

    # quaternion dot-product loss; rsqrt(max(|v|^2, eps^2)) == 1/max(||v||,eps)
    pr_sq = jnp.sum(pr * pr, axis=1, keepdims=True)   # (B, 1)
    gr_sq = jnp.sum(gr * gr, axis=1, keepdims=True)   # (B, 1)
    pg = jnp.sum(pr * gr, axis=1, keepdims=True)      # (B, 1)

    eps_sq = jnp.float32(EPS * EPS)
    inv_pr = lax.rsqrt(jnp.maximum(pr_sq, eps_sq))
    inv_gr = lax.rsqrt(jnp.maximum(gr_sq, eps_sq))
    rot_loss = 1.0 - jnp.sum(jnp.abs(pg * inv_pr * inv_gr)) * inv_b

    # mean((||p|| - 1)^2) == mean(||p||^2) - 2*mean(||p||) + 1   (reuses pr_sq)
    quat_norm_loss = (jnp.sum(pr_sq) - 2.0 * jnp.sum(jnp.sqrt(pr_sq))) * inv_b + 1.0

    total = s_ref[2] * trans_loss + s_ref[3] * rot_loss + s_ref[4] * quat_norm_loss
    out_ref[0] = total
    out_ref[1] = trans_loss
    out_ref[2] = rot_loss
    out_ref[3] = quat_norm_loss


# --------------------------------------------------------------------------
# Large-batch path: feature-major (D, B) layout, batch tiled over the grid.
# --------------------------------------------------------------------------
def _combined_loss_tiled_kernel(s_ref, n_ref, pr_ref, gr_ref, pt_ref, gt_ref,
                                out_ref, acc_ref):
    """
    s_ref : (5,) f32 SMEM [1/B, 1/(3B), t_w, r_w, q_w]
    n_ref : (1,) i32 SMEM [B]                     (masks the partial last tile)
    pr_ref/gr_ref : (4, T) blocks of (4, B)       (pred / gt quaternion, feature-major)
    pt_ref/gt_ref : (3, T) blocks of (3, B)       (pred / gt translation, feature-major)
    acc_ref : (4, T) f32 VMEM running per-lane partial sums
              rows: [sum d^2, sum |dot|, sum |p|^2, sum ||p||]
    """
    i = pl.program_id(0)

    @pl.when(i == 0)
    def _():
        acc_ref[...] = jnp.zeros_like(acc_ref)

    f32 = jnp.float32
    # Sublane row views -> pure VPU adds for the per-row feature sums.
    pr0 = pr_ref[0:1, :].astype(f32)
    pr1 = pr_ref[1:2, :].astype(f32)
    pr2 = pr_ref[2:3, :].astype(f32)
    pr3 = pr_ref[3:4, :].astype(f32)
    gr0 = gr_ref[0:1, :].astype(f32)
    gr1 = gr_ref[1:2, :].astype(f32)
    gr2 = gr_ref[2:3, :].astype(f32)
    gr3 = gr_ref[3:4, :].astype(f32)

    d0 = pt_ref[0:1, :].astype(f32) - gt_ref[0:1, :].astype(f32)
    d1 = pt_ref[1:2, :].astype(f32) - gt_ref[1:2, :].astype(f32)
    d2 = pt_ref[2:3, :].astype(f32) - gt_ref[2:3, :].astype(f32)

    dd = d0 * d0 + d1 * d1 + d2 * d2                               # (1, T)
    pr_sq = pr0 * pr0 + pr1 * pr1 + pr2 * pr2 + pr3 * pr3          # (1, T)
    gr_sq = gr0 * gr0 + gr1 * gr1 + gr2 * gr2 + gr3 * gr3          # (1, T)
    pg = pr0 * gr0 + pr1 * gr1 + pr2 * gr2 + pr3 * gr3             # (1, T)

    eps_sq = f32(EPS * EPS)
    abs_dot = jnp.abs(pg * lax.rsqrt(jnp.maximum(pr_sq, eps_sq))
                         * lax.rsqrt(jnp.maximum(gr_sq, eps_sq)))  # (1, T)
    pr_norm = jnp.sqrt(pr_sq)                                      # (1, T)

    tile = dd.shape[1]
    col = i * tile + lax.broadcasted_iota(jnp.int32, (1, tile), 1)
    valid = col < n_ref[0]                         # mask partial last tile

    acc_ref[0:1, :] += jnp.where(valid, dd, 0.0)
    acc_ref[1:2, :] += jnp.where(valid, abs_dot, 0.0)
    acc_ref[2:3, :] += jnp.where(valid, pr_sq, 0.0)
    acc_ref[3:4, :] += jnp.where(valid, pr_norm, 0.0)

    @pl.when(i == pl.num_programs(0) - 1)
    def _():
        # Only cross-lane (XLU) reduces in the whole kernel: 4, done once.
        s_dd = jnp.sum(acc_ref[0:1, :])
        s_absdot = jnp.sum(acc_ref[1:2, :])
        s_prsq = jnp.sum(acc_ref[2:3, :])
        s_prnorm = jnp.sum(acc_ref[3:4, :])

        inv_b = s_ref[0]
        trans_loss = s_dd * s_ref[1]
        rot_loss = 1.0 - s_absdot * inv_b
        quat_norm_loss = (s_prsq - 2.0 * s_prnorm) * inv_b + 1.0
        out_ref[0] = (s_ref[2] * trans_loss + s_ref[3] * rot_loss
                      + s_ref[4] * quat_norm_loss)
        out_ref[1] = trans_loss
        out_ref[2] = rot_loss
        out_ref[3] = quat_norm_loss


# --------------------------------------------------------------------------
# Wrapper
# --------------------------------------------------------------------------
def combined_loss(pred_rotation, pred_translation, gt_rotation, gt_translation,
                  translation_weight=TRANSLATION_LOSS_WEIGHT,
                  rotation_weight=ROTATION_LOSS_WEIGHT,
                  quaternion_norm_weight=QUATERNION_NORM_WEIGHT,
                  batch_tile=None):
    batch = pred_rotation.shape[0]
    if batch == 0:
        raise ValueError("combined_loss: batch size must be >= 1")

    # Runtime scalars in SMEM (changing the weights never recompiles).
    scal = jnp.stack([
        jnp.asarray(1.0 / batch, jnp.float32),
        jnp.asarray(1.0 / (batch * T_DIM), jnp.float32),
        jnp.asarray(translation_weight, jnp.float32),
        jnp.asarray(rotation_weight, jnp.float32),
        jnp.asarray(quaternion_norm_weight, jnp.float32),
    ])

    use_tiled = (batch_tile is not None) or (batch > _SMALL_BATCH_MAX)

    if not use_tiled:
        # Latency-bound scalar kernel: single block, no grid, no extra XLA ops.
        out = pl.pallas_call(
            _combined_loss_small_kernel,
            out_shape=jax.ShapeDtypeStruct((4,), jnp.float32),
            in_specs=[pl.BlockSpec(memory_space=pltpu.SMEM),   # scalars
                      pl.BlockSpec(memory_space=pltpu.VMEM),   # pred_rotation
                      pl.BlockSpec(memory_space=pltpu.VMEM),   # gt_rotation
                      pl.BlockSpec(memory_space=pltpu.VMEM),   # pred_translation
                      pl.BlockSpec(memory_space=pltpu.VMEM)],  # gt_translation
            out_specs=pl.BlockSpec(memory_space=pltpu.SMEM),
        )(scal, pred_rotation, gt_rotation, pred_translation, gt_translation)
    else:
        tile = _DEFAULT_BATCH_TILE if batch_tile is None else int(batch_tile)
        tile = max(128, ((tile + 127) // 128) * 128)           # lane-aligned
        n_steps = pl.cdiv(batch, tile)

        # Lane-dense, feature-major layout: batch on the 128-lane axis.
        # TODO(synk): if the caller can supply feature-major (D, B) tensors
        # directly, drop these transposes (one HBM round-trip each).
        pr_t = jnp.transpose(pred_rotation)        # (4, B)
        gr_t = jnp.transpose(gt_rotation)          # (4, B)
        pt_t = jnp.transpose(pred_translation)     # (3, B)
        gt_t = jnp.transpose(gt_translation)       # (3, B)
        n_arr = jnp.array([batch], dtype=jnp.int32)

        out = pl.pallas_call(
            _combined_loss_tiled_kernel,
            grid=(n_steps,),
            out_shape=jax.ShapeDtypeStruct((4,), jnp.float32),
            in_specs=[pl.BlockSpec(memory_space=pltpu.SMEM),          # scalars
                      pl.BlockSpec(memory_space=pltpu.SMEM),          # batch size
                      pl.BlockSpec((R_DIM, tile), lambda i: (0, i)),  # pred_rot.T
                      pl.BlockSpec((R_DIM, tile), lambda i: (0, i)),  # gt_rot.T
                      pl.BlockSpec((T_DIM, tile), lambda i: (0, i)),  # pred_trans.T
                      pl.BlockSpec((T_DIM, tile), lambda i: (0, i))], # gt_trans.T
            out_specs=pl.BlockSpec(memory_space=pltpu.SMEM),
            scratch_shapes=[pltpu.VMEM((4, tile), jnp.float32)],
            compiler_params=pltpu.CompilerParams(
                dimension_semantics=("arbitrary",)),
        )(scal, n_arr, pr_t, gr_t, pt_t, gt_t)

    # Module semantics: four scalars (the four tiny slices are the only
    # host-side ops; callers wanting none can consume the (4,) array directly).
    return out[0], out[1], out[2], out[3]


# --------------------------------------------------------------------------
# Pure-JAX reference mirroring the PyTorch forward (for sanity checking).
# --------------------------------------------------------------------------
def _reference(pred_rotation, pred_translation, gt_rotation, gt_translation):
    trans = jnp.mean((pred_translation - gt_translation) ** 2)

    def norm(q):
        n = jnp.linalg.norm(q, axis=1, keepdims=True)
        return q / jnp.maximum(n, EPS)

    dot = jnp.abs(jnp.sum(norm(pred_rotation) * norm(gt_rotation), axis=1))
    rot = jnp.mean(1.0 - dot)
    qn = jnp.mean((jnp.linalg.norm(pred_rotation, axis=1) - 1.0) ** 2)
    total = (TRANSLATION_LOSS_WEIGHT * trans + ROTATION_LOSS_WEIGHT * rot
             + QUATERNION_NORM_WEIGHT * qn)
    return total, trans, rot, qn


if __name__ == "__main__":
    key = jax.random.PRNGKey(0)
    ks = jax.random.split(key, 8)

    def rand_inputs(k1, k2, k3, k4, b):
        return (jax.random.normal(k1, (b, R_DIM), jnp.float32),
                jax.random.normal(k2, (b, T_DIM), jnp.float32),
                jax.random.normal(k3, (b, R_DIM), jnp.float32),
                jax.random.normal(k4, (b, T_DIM), jnp.float32))

    def check(outs, refs):
        for o, r in zip(outs, refs):
            o_f, r_f = float(o), float(r)
            assert abs(o_f - r_f) <= 1e-5 + 1e-5 * abs(r_f), (o_f, r_f)

    # 1) Small-batch (grid-less) path at the module's typical shapes.
    pr, pt, gr, gt = rand_inputs(ks[0], ks[1], ks[2], ks[3], 2)
    outs = jax.block_until_ready(combined_loss(pr, pt, gr, gt))
    check(outs, _reference(pr, pt, gr, gt))

    # 2) Tiled, lane-dense path (forced with a small tile so the batch grid
    #    and the masked partial last tile are exercised: 300 = 2*128 + 44).
    pr, pt, gr, gt = rand_inputs(ks[4], ks[5], ks[6], ks[7], 300)
    outs = jax.block_until_ready(combined_loss(pr, pt, gr, gt, batch_tile=128))
    check(outs, _reference(pr, pt, gr, gt))

    print("KERNEL_OK")
</pallas_src>

<mosaic_0001>
module attributes {stable_mosaic.version = 11 : i64} {
  func.func @_combined_loss_small_kernel(%arg0: memref<5xf32, #tpu.memory_space<smem>>, %arg1: memref<2x4xf32, #tpu.memory_space<vmem>>, %arg2: memref<2x4xf32, #tpu.memory_space<vmem>>, %arg3: memref<2x3xf32, #tpu.memory_space<vmem>>, %arg4: memref<2x3xf32, #tpu.memory_space<vmem>>, %arg5: memref<4xf32, #tpu.memory_space<smem>>) attributes {dimension_semantics = [], scalar_prefetch = 0 : i64, scratch_operands = 0 : i64, tpu.core_type = #tpu.core_type<tc>} {
    %c0 = arith.constant 0 : index
    %c0_0 = arith.constant 0 : index
    %0 = vector.load %arg1[%c0, %c0_0] : memref<2x4xf32, #tpu.memory_space<vmem>>, vector<2x4xf32>
    %c0_1 = arith.constant 0 : index
    %c0_2 = arith.constant 0 : index
    %1 = vector.load %arg2[%c0_1, %c0_2] : memref<2x4xf32, #tpu.memory_space<vmem>>, vector<2x4xf32>
    %c0_3 = arith.constant 0 : index
    %c0_4 = arith.constant 0 : index
    %2 = vector.load %arg3[%c0_3, %c0_4] : memref<2x3xf32, #tpu.memory_space<vmem>>, vector<2x3xf32>
    %c0_5 = arith.constant 0 : index
    %c0_6 = arith.constant 0 : index
    %3 = vector.load %arg4[%c0_5, %c0_6] : memref<2x3xf32, #tpu.memory_space<vmem>>, vector<2x3xf32>
    %c0_7 = arith.constant 0 : index
    %4 = memref.load %arg0[%c0_7] : memref<5xf32, #tpu.memory_space<smem>>
    %c1 = arith.constant 1 : index
    %5 = memref.load %arg0[%c1] : memref<5xf32, #tpu.memory_space<smem>>
    %6 = arith.subf %2, %3 : vector<2x3xf32>
    %7 = arith.mulf %6, %6 : vector<2x3xf32>
    %8 = vector.shape_cast %7 : vector<2x3xf32> to vector<1x2x3xf32>
    %cst = arith.constant dense<0.000000e+00> : vector<1xf32>
    %9 = vector.multi_reduction <add>, %8, %cst [1, 2] : vector<1x2x3xf32> to vector<1xf32>
    %10 = vector.shape_cast %9 : vector<1xf32> to vector<1x1x1xf32>
    %11 = vector.extract %10[0, 0, 0] : f32 from vector<1x1x1xf32>
    %12 = arith.mulf %11, %5 : f32
    %13 = arith.mulf %0, %0 : vector<2x4xf32>
    %cst_8 = arith.constant dense<0.000000e+00> : vector<2xf32>
    %14 = vector.multi_reduction <add>, %13, %cst_8 [1] : vector<2x4xf32> to vector<2xf32>
    %15 = vector.shape_cast %14 : vector<2xf32> to vector<2x1xf32>
    %16 = arith.mulf %1, %1 : vector<2x4xf32>
    %cst_9 = arith.constant dense<0.000000e+00> : vector<2xf32>
    %17 = vector.multi_reduction <add>, %16, %cst_9 [1] : vector<2x4xf32> to vector<2xf32>
    %18 = vector.shape_cast %17 : vector<2xf32> to vector<2x1xf32>
    %19 = arith.mulf %0, %1 : vector<2x4xf32>
    %cst_10 = arith.constant dense<0.000000e+00> : vector<2xf32>
    %20 = vector.multi_reduction <add>, %19, %cst_10 [1] : vector<2x4xf32> to vector<2xf32>
    %21 = vector.shape_cast %20 : vector<2xf32> to vector<2x1xf32>
    %cst_11 = arith.constant 1.000000e-24 : f32
    %22 = vector.broadcast %cst_11 : f32 to vector<2x1xf32>
    %23 = arith.maximumf %15, %22 : vector<2x1xf32>
    %24 = math.rsqrt %23 : vector<2x1xf32>
    %cst_12 = arith.constant 1.000000e-24 : f32
    %25 = vector.broadcast %cst_12 : f32 to vector<2x1xf32>
    %26 = arith.maximumf %18, %25 : vector<2x1xf32>
    %27 = math.rsqrt %26 : vector<2x1xf32>
    %28 = arith.mulf %21, %24 : vector<2x1xf32>
    %29 = arith.mulf %28, %27 : vector<2x1xf32>
    %30 = math.absf %29 : vector<2x1xf32>
    %31 = vector.shape_cast %30 : vector<2x1xf32> to vector<1x2x1xf32>
    %cst_13 = arith.constant dense<0.000000e+00> : vector<1xf32>
    %32 = vector.multi_reduction <add>, %31, %cst_13 [1, 2] : vector<1x2x1xf32> to vector<1xf32>
    %33 = vector.shape_cast %32 : vector<1xf32> to vector<1x1x1xf32>
    %34 = vector.extract %33[0, 0, 0] : f32 from vector<1x1x1xf32>
    %35 = arith.mulf %34, %4 : f32
    %cst_14 = arith.constant 1.000000e+00 : f32
    %36 = arith.subf %cst_14, %35 : f32
    %37 = vector.shape_cast %15 : vector<2x1xf32> to vector<1x2x1xf32>
    %cst_15 = arith.constant dense<0.000000e+00> : vector<1xf32>
    %38 = vector.multi_reduction <add>, %37, %cst_15 [1, 2] : vector<1x2x1xf32> to vector<1xf32>
    %39 = vector.shape_cast %38 : vector<1xf32> to vector<1x1x1xf32>
    %40 = vector.extract %39[0, 0, 0] : f32 from vector<1x1x1xf32>
    %41 = math.sqrt %15 : vector<2x1xf32>
    %42 = vector.shape_cast %41 : vector<2x1xf32> to vector<1x2x1xf32>
    %cst_16 = arith.constant dense<0.000000e+00> : vector<1xf32>
    %43 = vector.multi_reduction <add>, %42, %cst_16 [1, 2] : vector<1x2x1xf32> to vector<1xf32>
    %44 = vector.shape_cast %43 : vector<1xf32> to vector<1x1x1xf32>
    %45 = vector.extract %44[0, 0, 0] : f32 from vector<1x1x1xf32>
    %cst_17 = arith.constant 2.000000e+00 : f32
    %46 = arith.mulf %cst_17, %45 : f32
    %47 = arith.subf %40, %46 : f32
    %48 = arith.mulf %47, %4 : f32
    %cst_18 = arith.constant 1.000000e+00 : f32
    %49 = arith.addf %48, %cst_18 : f32
    %c2 = arith.constant 2 : index
    %50 = memref.load %arg0[%c2] : memref<5xf32, #tpu.memory_space<smem>>
    %51 = arith.mulf %50, %12 : f32
    %c3 = arith.constant 3 : index
    %52 = memref.load %arg0[%c3] : memref<5xf32, #tpu.memory_space<smem>>
    %53 = arith.mulf %52, %36 : f32
    %54 = arith.addf %51, %53 : f32
    %c4 = arith.constant 4 : index
    %55 = memref.load %arg0[%c4] : memref<5xf32, #tpu.memory_space<smem>>
    %56 = arith.mulf %55, %49 : f32
    %57 = arith.addf %54, %56 : f32
    %c0_19 = arith.constant 0 : index
    %58 = memref.load %arg5[%c0_19] : memref<4xf32, #tpu.memory_space<smem>>
    memref.store %57, %arg5[%c0_19] : memref<4xf32, #tpu.memory_space<smem>>
    %c1_20 = arith.constant 1 : index
    %59 = memref.load %arg5[%c1_20] : memref<4xf32, #tpu.memory_space<smem>>
    memref.store %12, %arg5[%c1_20] : memref<4xf32, #tpu.memory_space<smem>>
    %c2_21 = arith.constant 2 : index
    %60 = memref.load %arg5[%c2_21] : memref<4xf32, #tpu.memory_space<smem>>
    memref.store %36, %arg5[%c2_21] : memref<4xf32, #tpu.memory_space<smem>>
    %c3_22 = arith.constant 3 : index
    %61 = memref.load %arg5[%c3_22] : memref<4xf32, #tpu.memory_space<smem>>
    memref.store %49, %arg5[%c3_22] : memref<4xf32, #tpu.memory_space<smem>>
    return
  }
}

</mosaic_0001>

<llo_original>
// kernel: tpu_custom_call.1
$region0: #{tpu_custom_call.1}
  #allocation0 [shape = 'u32[]', space=smem, size = 0x4, offset = 0x4, fixed_abs, tag = 'smem constant byte address 0x4 - core index']
  #allocation1 [shape = 'u32[144,128]{1,0:T(1,128)}', space=vmem, size = 0x12000, scoped, tag = 'internal scratch']
  %s0 = inlined_call_operand.hbm [shape: f32[5], index: 0, kind: input, shape index: {}]
  %s1 = inlined_call_operand.hbm [shape: f32[2,4], index: 1, kind: input, shape index: {}]
  %s2 = inlined_call_operand.vmem [shape: f32[2,4], index: 2, kind: input, shape index: {}]
  %s3 = inlined_call_operand.vmem [shape: f32[2,3], index: 3, kind: input, shape index: {}]
  %s4 = inlined_call_operand.vmem [shape: f32[2,3], index: 4, kind: input, shape index: {}]
  %s5 = inlined_call_operand.hbm [shape: f32[4], index: 5, kind: output, shape index: {}]
  %s6 = sld [smem:[#allocation0]]
  $region38: #{tpu_custom_call.1} parent=0
    _
  %s8 = ssub.s32 1, %s6
  %s9 = scalar_select 0, %s8, %s6
  $region1: #{tpu_custom_call.1} parent=0
    #allocation2 [shape = 'u8[512]{0}', space=smem, size = 0x200, scoped, tag = 'input window, operand 0, single buffered']
    #allocation3 [shape = 's32[1]{0}', space=sflag, size = 0x4, scoped, tag = 'scoped memory for tpu_custom_call.1']
    #allocation4 [shape = 's32[1]{0}', space=sflag, size = 0x4, scoped, tag = 'scoped memory for tpu_custom_call.1']
    #allocation5 [shape = 's32[1]{0}', space=sflag, size = 0x4, scoped, tag = 'scoped memory for tpu_custom_call.1']
    #allocation6 [shape = 'u8[1024]{0}', space=vmem, size = 0x400, scoped, tag = 'input window, operand 1, single buffered']
    #allocation7 [shape = 'u8[512]{0}', space=smem, size = 0x200, scoped, tag = 'output window, operand 0, single buffered']
    %10 = vsyncpa [#allocation4], 0
    %11 = vsyncpa [#allocation3], 0
    %12 = vsyncpa [#allocation5], 0
    // Predicated region
    $region2: #{tpu_custom_call.1} parent=1 // pred_check
      _
    $region3: #{tpu_custom_call.1} parent=1 // pred_check_branch
      %14 = sbr.rel (0) target = $region5
    $region4: #{tpu_custom_call.1} parent=1 // pred_region
      %s16 = ssub.s32 16, 16
      %17 = vsyncadd [#allocation4], %s16
      %20 = dma.hbm_to_smem %s0, 16, [#allocation2], [#allocation4]
    $region5: #{tpu_custom_call.1} parent=1 // pred_fallthru
      _
    // Predicated region
    $region6: #{tpu_custom_call.1} parent=1 // pred_check
      _
    $region7: #{tpu_custom_call.1} parent=1 // pred_check_branch
      %22 = sbr.rel (0) target = $region9
    $region8: #{tpu_custom_call.1} parent=1 // pred_region
      %s24 = ssub.s32 32, 32
      %25 = vsyncadd [#allocation3], %s24
      %s27 = sshll.u32 [#allocation6], 4
      %s28 = int_to_ptr.vmem [resolvable:$true] %s27
      %30 = dma.hbm_to_vmem [thread:$0]  %s1, 32, %s28, [#allocation3]
    $region9: #{tpu_custom_call.1} parent=1 // pred_fallthru
      _
    // Predicated region
    $region10: #{tpu_custom_call.1} parent=1 // pred_check
      _
    $region11: #{tpu_custom_call.1} parent=1 // pred_check_branch
      %32 = sbr.rel (0) target = $region13
    $region12: #{tpu_custom_call.1} parent=1 // pred_region
      _
    $region13: #{tpu_custom_call.1} parent=1 // pred_fallthru
      _
    // Predicated region
    $region14: #{tpu_custom_call.1} parent=1 // pred_check
      _
    $region15: #{tpu_custom_call.1} parent=1 // pred_check_branch
      %34 = sbr.rel (0) target = $region17
    $region16: #{tpu_custom_call.1} parent=1 // pred_region
      _
    $region17: #{tpu_custom_call.1} parent=1 // pred_fallthru
      _
    // Predicated region
    $region18: #{tpu_custom_call.1} parent=1 // pred_check
      _
    $region19: #{tpu_custom_call.1} parent=1 // pred_check_branch
      %36 = sbr.rel (0) target = $region21
    $region20: #{tpu_custom_call.1} parent=1 // pred_region
      _
    $region21: #{tpu_custom_call.1} parent=1 // pred_fallthru
      _
    // Predicated region
    $region22: #{tpu_custom_call.1} parent=1 // pred_check
      _
    $region23: #{tpu_custom_call.1} parent=1 // pred_check_branch
      %38 = sbr.rel (0) target = $region25
    $region24: #{tpu_custom_call.1} parent=1 // pred_region
      %39 = dma.done [#allocation4], 16
    $region25: #{tpu_custom_call.1} parent=1 // pred_fallthru
      _
    // Predicated region
    $region26: #{tpu_custom_call.1} parent=1 // pred_check
      _
    $region27: #{tpu_custom_call.1} parent=1 // pred_check_branch
      %41 = sbr.rel (0) target = $region29
    $region28: #{tpu_custom_call.1} parent=1 // pred_region
      %42 = dma.done [#allocation3], 32
    $region29: #{tpu_custom_call.1} parent=1 // pred_fallthru
      _
    %43 = sfence
    %v44 = vld [vmem:[#allocation6] sm:$0x3]
    %v45 = vld [vmem:[%s2] sm:$0x3]
    %v46 = vld [vmem:[%s3] sm:$0x3]
    %v47 = vld [vmem:[%s4] sm:$0x3]
    %s48 = sld [smem:[#allocation2]]
    %s49 = sld [smem:[#allocation2 + $0x1]]
    %v50 = vsub.f32 %v46, %v47
    %v51 = vmul.f32 %v50, %v50
    %vm52 = vcmask 17408
    %v53 = vsel %vm52, %v51, 0.0
    %54 = vadd.xlane.f32.xlu0 %v53
    %v55 = vpop.xlane.xlu0 %54
    %v56 = vrot.slane %v55, 4
    %v57 = vadd.f32 %v55, %v56
    %v58 = vrot.slane %v57, 2
    %v59 = vadd.f32 %v57, %v58
    %v60 = vrot.slane %v59, 1
    %v61 = vadd.f32 %v59, %v60
    %s62 = vtos %v61
    %s63 = smul.f32 %s62, %s49
    %v64 = vmul.f32 %v44, %v44
    %vm65 = vcmask 25600
    %v66 = vsel %vm65, %v64, 0.0
    %67 = vadd.xlane.f32.xlu0 %v66
    %v68 = vpop.xlane.xlu0 %67
    %v69 = vmul.f32 %v45, %v45
    %v70 = vsel %vm65, %v69, 0.0
    %71 = vadd.xlane.f32.xlu0 %v70
    %v72 = vpop.xlane.xlu0 %71
    %v73 = vmul.f32 %v44, %v45
    %v74 = vsel %vm65, %v73, 0.0
    %75 = vadd.xlane.f32.xlu0 %v74
    %v76 = vpop.xlane.xlu0 %75
    %v77 = vmax.f32 %v68, 1e-24
    %v78 = vrsqrt.pop %v77
    %v79 = vmax.f32 %v72, 1e-24
    %v80 = vrsqrt.pop %v79
    %v81 = vmul.f32 %v76, %v78
    %v82 = vmul.f32 %v81, %v80
    %v83 = vand.u32 2147483647, %v82
    %vm84 = vcmask 1024
    %v85 = vsel %vm84, %v83, 0.0
    %86 = vadd.xlane.f32.xlu0 %v85
    %v87 = vpop.xlane.xlu0 %86
    %v88 = vrot.slane %v87, 4
    %v89 = vadd.f32 %v87, %v88
    %v90 = vrot.slane %v89, 2
    %v91 = vadd.f32 %v89, %v90
    %v92 = vrot.slane %v91, 1
    %v93 = vadd.f32 %v91, %v92
    %s94 = vtos %v93
    %s95 = smul.f32 %s94, %s48
    %s96 = ssub.f32 1.0, %s95
    %v97 = vsel %vm84, %v68, 0.0
    %98 = vadd.xlane.f32.xlu0 %v97
    %v99 = vpop.xlane.xlu0 %98
    %v100 = vrot.slane %v99, 4
    %v101 = vadd.f32 %v99, %v100
    %v102 = vrot.slane %v101, 2
    %v103 = vadd.f32 %v101, %v102
    %v104 = vrot.slane %v103, 1
    %v105 = vadd.f32 %v103, %v104
    %s106 = vtos %v105
    %v107 = vrsqrt.pop %v68
    %v108 = vmul.f32 %v68, %v107
    %vm109 = vcmp.eq.f32.partialorder %v68, inf
    %v110 = vsel %vm109, %v68, %v108
    %vm111 = vcmp.eq.f32.partialorder %v68, 0.0
    %v112 = vand.u32 %v68, 2147483648
    %v113 = vsel %vm111, %v112, %v110
    %v114 = vsel %vm84, %v113, 0.0
    %115 = vadd.xlane.f32.xlu0 %v114
    %v116 = vpop.xlane.xlu0 %115
    %v117 = vrot.slane %v116, 4
    %v118 = vadd.f32 %v116, %v117
    %v119 = vrot.slane %v118, 2
    %v120 = vadd.f32 %v118, %v119
    %v121 = vrot.slane %v120, 1
    %v122 = vadd.f32 %v120, %v121
    %s123 = vtos %v122
    %s124 = smul.f32 %s123, 2.0
    %s125 = ssub.f32 %s106, %s124
    %s126 = smul.f32 %s125, %s48
    %s127 = sadd.f32 %s126, 1.0
    %s128 = sld [smem:[#allocation2 + $0x2]]
    %s129 = smul.f32 %s128, %s63
    %s130 = sld [smem:[#allocation2 + $0x3]]
    %s131 = smul.f32 %s130, %s96
    %s132 = sadd.f32 %s129, %s131
    %s133 = sld [smem:[#allocation2 + $0x4]]
    %s134 = smul.f32 %s133, %s127
    %s135 = sadd.f32 %s132, %s134
    %s136 = scalar_lea.smem [#allocation7], 0
    %137 = sst [smem:[%s136]] %s135
    %s138 = scalar_lea.smem [#allocation7], 1
    %139 = sst [smem:[%s138]] %s63
    %s140 = scalar_lea.smem [#allocation7], 2
    %141 = sst [smem:[%s140]] %s96
    %s142 = scalar_lea.smem [#allocation7], 3
    %143 = sst [smem:[%s142]] %s127
    // Predicated region
    $region30: #{tpu_custom_call.1} parent=1 // pred_check
      _
    $region31: #{tpu_custom_call.1} parent=1 // pred_check_branch
      %145 = sbr.rel (0) target = $region33
    $region32: #{tpu_custom_call.1} parent=1 // pred_region
      %s147 = ssub.s32 16, 16
      %148 = vsyncadd [#allocation5], %s147
      %151 = dma.smem_to_hbm [#allocation7], 16, %s5, [#allocation5]
    $region33: #{tpu_custom_call.1} parent=1 // pred_fallthru
      _
    // Predicated region
    $region34: #{tpu_custom_call.1} parent=1 // pred_check
      _
    $region35: #{tpu_custom_call.1} parent=1 // pred_check_branch
      %153 = sbr.rel (0) target = $region37
    $region36: #{tpu_custom_call.1} parent=1 // pred_region
      %154 = dma.done [#allocation5], 16
    $region37: #{tpu_custom_call.1} parent=1 // pred_fallthru
      _
    %155 = sfence
    %156 = vsyncpa [#allocation3], 1
    %157 = vsyncpa [#allocation4], 1
    %158 = vsyncpa [#allocation5], 1

</llo_original>
